<compile_context>
chip_gen: v5e
topology: v5e:2x2
jax: 0.10.0
libtpu: 0.0.40
codegen_flags: <defaults>
</compile_context>

<pallas_src>
import math
import functools

import jax
import jax.numpy as jnp
from jax.experimental import pallas as pl
from jax.experimental.pallas import tpu as pltpu


def _round_up(x, m):
    return ((x + m - 1) // m) * m


# ----------------------------------------------------------------------------
# One-time parameter preparation (outside the hot path).
# ----------------------------------------------------------------------------
def prepare_latent_input_params(weight, bias_lin, bias_act, *, lr_mul=1.0,
                                tn=2048, weight_dtype=jnp.float32):
    """Fold constants, pre-transpose and pad the parameters once.

    weight:   [O, D]   (PyTorch EqualLinear layout)
    bias_lin: [O]      EqualLinear bias
    bias_act: [O]      FusedLeakyReLU bias
    Returns a dict with:
      w_t:    [D, O_pad]  (weight * 2*scale).T, zero-padded, dtype=weight_dtype
      biases: [2, O_pad]  row 0 = 2*lr_mul*bias_lin, row 1 = sqrt(2)*bias_act
      tn, out_dim
    """
    O, D = weight.shape
    scale = (1.0 / math.sqrt(D)) * lr_mul

    O_128 = _round_up(O, 128)
    TN = min(_round_up(tn, 128), O_128)        # weight tile width (mult. of 128)
    O_pad = _round_up(O, TN)                   # grid divides evenly

    # Fold both sqrt(2) activation scales (positive homogeneity of leaky-relu).
    w_t = (weight * (2.0 * scale)).T.astype(weight_dtype)            # [D, O]
    if O_pad != O:
        w_t = jnp.pad(w_t, ((0, 0), (0, O_pad - O)))
    b_lin_p = jnp.pad(bias_lin * (2.0 * lr_mul), (0, O_pad - O))
    b_act_p = jnp.pad(bias_act * math.sqrt(2.0), (0, O_pad - O))
    biases = jnp.stack([b_lin_p, b_act_p]).astype(jnp.float32)       # [2, O_pad]

    return {"w_t": w_t, "biases": biases, "tn": TN, "out_dim": O}


# ----------------------------------------------------------------------------
# Kernel body: one [D, TN] weight tile per grid step, x resident.
# ----------------------------------------------------------------------------
def _latent_input_kernel(x_ref, w_ref, b_ref, o_ref, *, neg_slope):
    # x_ref: [B_pad, D]   (whole padded batch, resident every tile)
    # w_ref: [D, TN]      (pre-scaled, pre-transposed weight tile)
    # b_ref: [2, TN]      (row 0: folded EqualLinear bias; row 1: folded act bias)
    # o_ref: [B_pad, TN]
    x = x_ref[...].astype(w_ref.dtype)         # no-op for f32; bf16 path if enabled
    h = jnp.dot(x, w_ref[...], preferred_element_type=jnp.float32)   # [B_pad, TN]

    b = b_ref[...]
    # fused_leaky_relu #1 (EqualLinear) — sqrt(2) already folded into scale/bias.
    h = h + b[0:1, :]
    h = jnp.maximum(h, neg_slope * h)
    # FusedLeakyReLU module — its sqrt(2) folded into its bias + the scale above.
    h = h + b[1:2, :]
    h = jnp.maximum(h, neg_slope * h)

    o_ref[...] = h.astype(o_ref.dtype)


# ----------------------------------------------------------------------------
# Forward pass (hot path): only the tiny x gets padded per call.
# ----------------------------------------------------------------------------
def latent_input_forward(inputs, params, *, channel, size):
    """inputs: [B, n_latents, latent_dim]; params from prepare_latent_input_params.
    Returns [B, channel, size, size]."""
    x = inputs[:, 0]                           # [B, D]  (glue: simple slice)
    B, D = x.shape
    w_t, biases = params["w_t"], params["biases"]
    TN, O = params["tn"], params["out_dim"]
    D_w, O_pad = w_t.shape
    assert D_w == D
    assert O == channel * size * size

    B_pad = _round_up(B, 8)                    # f32 sublane quantum
    x_p = jnp.pad(x, ((0, B_pad - B), (0, 0))) if B_pad != B else x
    grid = (O_pad // TN,)

    w_itemsize = int(jnp.dtype(w_t.dtype).itemsize)
    # Double-buffered weight + output tiles, resident x, double-buffered biases.
    vmem_bytes = (2 * TN * D * w_itemsize + 2 * B_pad * TN * 4
                  + B_pad * D * 4 + 2 * 2 * TN * 4)
    cost = pl.CostEstimate(
        flops=2 * B_pad * D * O_pad,
        transcendentals=0,
        bytes_accessed=(D * O_pad * w_itemsize
                        + 4 * (B_pad * D + B_pad * O_pad + 2 * O_pad)),
    )

    out = pl.pallas_call(
        functools.partial(_latent_input_kernel, neg_slope=0.2),
        out_shape=jax.ShapeDtypeStruct((B_pad, O_pad), jnp.float32),
        grid=grid,
        in_specs=[
            pl.BlockSpec((B_pad, D), lambda j: (0, 0)),   # x: resident
            pl.BlockSpec((D, TN), lambda j: (0, j)),      # weight tile (streamed)
            pl.BlockSpec((2, TN), lambda j: (0, j)),      # packed biases tile
        ],
        out_specs=pl.BlockSpec((B_pad, TN), lambda j: (0, j)),
        compiler_params=pltpu.CompilerParams(
            dimension_semantics=("parallel",),            # shards O tiles on v7x
            vmem_limit_bytes=int(min(max(2 * vmem_bytes, 16 << 20), 48 << 20)),
        ),
        cost_estimate=cost,
    )(x_p, w_t, biases)

    return out[:B, :O].reshape(B, channel, size, size)


if __name__ == "__main__":
    # Small shapes consistent with the module.
    batch = 2
    n_latents = 8
    latent_dim = 32
    channel = 4
    size = 4
    out_dim = channel * size * size            # 64
    lr_mul = 1.0

    key = jax.random.PRNGKey(0)
    k_in, k_w, k_unused = jax.random.split(key, 3)

    # Deterministic parameter init mirroring the PyTorch __init__:
    #   EqualLinear.weight ~ randn(out_dim, in_dim) / lr_mul
    #   EqualLinear.bias   = zeros(out_dim)    (bias_init=0)
    #   FusedLeakyReLU.bias = zeros(out_dim)
    #   LatentInput.input  ~ randn(1)          (declared but unused in forward)
    weight = jax.random.normal(k_w, (out_dim, latent_dim), jnp.float32) / lr_mul
    bias_lin = jnp.zeros((out_dim,), jnp.float32)
    bias_act = jnp.zeros((out_dim,), jnp.float32)
    _unused_input_param = jax.random.normal(k_unused, (1,), jnp.float32)  # not used in forward

    inputs = jax.random.normal(k_in, (batch, n_latents, latent_dim), jnp.float32)

    # One-time prep (in a real model this happens at init, not per call).
    params = prepare_latent_input_params(
        weight, bias_lin, bias_act, lr_mul=lr_mul, tn=2048)

    out = latent_input_forward(inputs, params, channel=channel, size=size)
    out = jax.block_until_ready(out)

    # Pure-JAX reference (exact module semantics) for a sanity check.
    x = inputs[:, 0]
    scale = 1.0 / math.sqrt(latent_dim) * lr_mul
    h = x @ (weight * scale).T
    h1 = h + bias_lin * lr_mul
    h1 = jnp.where(h1 >= 0, h1, 0.2 * h1) * math.sqrt(2.0)
    h2 = h1 + bias_act
    h2 = jnp.where(h2 >= 0, h2, 0.2 * h2) * math.sqrt(2.0)
    ref = h2.reshape(batch, channel, size, size)

    assert out.shape == (batch, channel, size, size)
    assert jnp.allclose(out, ref, atol=1e-5, rtol=1e-5)
    print("KERNEL_OK")
</pallas_src>

<mosaic_0001>
module attributes {stable_mosaic.version = 11 : i64} {
  func.func @_latent_input_kernel(%arg0: i32, %arg1: memref<8x32xf32, #tpu.memory_space<vmem>>, %arg2: memref<32x128xf32, #tpu.memory_space<vmem>>, %arg3: memref<2x128xf32, #tpu.memory_space<vmem>>, %arg4: memref<8x128xf32, #tpu.memory_space<vmem>>) attributes {dimension_semantics = [#tpu.dimension_semantics<parallel>], iteration_bounds = array<i64: 1>, scalar_prefetch = 0 : i64, scratch_operands = 0 : i64, tpu.core_type = #tpu.core_type<tc>, window_params = [{pipeline_mode = #tpu.pipeline_mode<synchronous>, transform_indices = @transform_0, window_bounds = array<i64: 8, 32>}, {transform_indices = @transform_1, window_bounds = array<i64: 32, 128>}, {transform_indices = @transform_2, window_bounds = array<i64: 2, 128>}, {transform_indices = @transform_3, window_bounds = array<i64: 8, 128>}]} {
    %c0 = arith.constant 0 : index
    %c0_0 = arith.constant 0 : index
    %0 = vector.load %arg1[%c0, %c0_0] : memref<8x32xf32, #tpu.memory_space<vmem>>, vector<8x32xf32>
    %c0_1 = arith.constant 0 : index
    %c0_2 = arith.constant 0 : index
    %1 = vector.load %arg2[%c0_1, %c0_2] : memref<32x128xf32, #tpu.memory_space<vmem>>, vector<32x128xf32>
    %cst = arith.constant dense<0.000000e+00> : vector<8x128xf32>
    %2 = tpu.matmul %0, %1, %cst {dimension_numbers = #tpu.dot_dimension_numbers<[1], [0], [0], [1], [0, 0, 1, 1], [], []>} : vector<8x32xf32>, vector<32x128xf32>, vector<8x128xf32> -> vector<8x128xf32>
    %c0_3 = arith.constant 0 : index
    %c0_4 = arith.constant 0 : index
    %3 = vector.load %arg3[%c0_3, %c0_4] : memref<2x128xf32, #tpu.memory_space<vmem>>, vector<2x128xf32>
    %4 = vector.extract_strided_slice %3 {offsets = [0, 0], sizes = [1, 128], strides = [1, 1]} : vector<2x128xf32> to vector<1x128xf32>
    %5 = vector.broadcast %4 : vector<1x128xf32> to vector<8x128xf32>
    %6 = arith.addf %2, %5 : vector<8x128xf32>
    %cst_5 = arith.constant 2.000000e-01 : f32
    %7 = vector.broadcast %cst_5 : f32 to vector<8x128xf32>
    %8 = arith.mulf %7, %6 : vector<8x128xf32>
    %9 = arith.maximumf %6, %8 : vector<8x128xf32>
    %10 = vector.extract_strided_slice %3 {offsets = [1, 0], sizes = [1, 128], strides = [1, 1]} : vector<2x128xf32> to vector<1x128xf32>
    %11 = vector.broadcast %10 : vector<1x128xf32> to vector<8x128xf32>
    %12 = arith.addf %9, %11 : vector<8x128xf32>
    %cst_6 = arith.constant 2.000000e-01 : f32
    %13 = vector.broadcast %cst_6 : f32 to vector<8x128xf32>
    %14 = arith.mulf %13, %12 : vector<8x128xf32>
    %15 = arith.maximumf %12, %14 : vector<8x128xf32>
    %c0_7 = arith.constant 0 : index
    %c0_8 = arith.constant 0 : index
    %16 = vector.load %arg4[%c0_7, %c0_8] : memref<8x128xf32, #tpu.memory_space<vmem>>, vector<8x128xf32>
    tpu.vector_store %arg4[%c0_7, %c0_8], %15 {strides = array<i32>} : memref<8x128xf32, #tpu.memory_space<vmem>>, vector<8x128xf32>,
    return
  }
  func.func @transform_0(%arg0: i32) -> (i32, i32) {
    %c0_i32 = arith.constant 0 : i32
    %c0_i32_0 = arith.constant 0 : i32
    %c0_i32_1 = arith.constant 0 : i32
    return %c0_i32, %c0_i32_0 : i32, i32
  }
  func.func @transform_1(%arg0: i32) -> (i32, i32) {
    %c0_i32 = arith.constant 0 : i32
    %c0_i32_0 = arith.constant 0 : i32
    return %c0_i32, %arg0 : i32, i32
  }
  func.func @transform_2(%arg0: i32) -> (i32, i32) {
    %c0_i32 = arith.constant 0 : i32
    %c0_i32_0 = arith.constant 0 : i32
    return %c0_i32, %arg0 : i32, i32
  }
  func.func @transform_3(%arg0: i32) -> (i32, i32) {
    %c0_i32 = arith.constant 0 : i32
    %c0_i32_0 = arith.constant 0 : i32
    return %c0_i32, %arg0 : i32, i32
  }
}

</mosaic_0001>

<llo_original>
// kernel: tpu_custom_call.1
$region0: #{tpu_custom_call.1}
  #allocation0 [shape = 'u32[]', space=smem, size = 0x4, offset = 0x4, fixed_abs, tag = 'smem constant byte address 0x4 - core index']
  #allocation1 [shape = 'u32[72,128]{1,0:T(1,128)}', space=vmem, size = 0x9000, scoped, tag = 'internal scratch']
  %s0 = inlined_call_operand.hbm [shape: f32[8,32], index: 0, kind: input, shape index: {}]
  %s1 = inlined_call_operand.hbm [shape: f32[32,128], index: 1, kind: input, shape index: {}]
  %s2 = inlined_call_operand.hbm [shape: f32[2,128], index: 2, kind: input, shape index: {}]
  %s3 = inlined_call_operand.hbm [shape: f32[8,128], index: 3, kind: output, shape index: {}]
  %s4 = sld [smem:[#allocation0]]
  $region34: #{tpu_custom_call.1} parent=0
    _
  %s6 = ssub.s32 1, %s4
  %s7 = scalar_select 0, %s6, %s4
  $region1: #{tpu_custom_call.1} parent=0
    #allocation2 [shape = 'u8[4096]{0}', space=vmem, size = 0x1000, scoped, tag = 'input window, operand 0, single buffered']
    #allocation3 [shape = 's32[1]{0}', space=sflag, size = 0x4, scoped, tag = 'scoped memory for tpu_custom_call.1']
    #allocation4 [shape = 's32[1]{0}', space=sflag, size = 0x4, scoped, tag = 'scoped memory for tpu_custom_call.1']
    #allocation5 [shape = 'u8[16384]{0}', space=vmem, size = 0x4000, scoped, tag = 'input window, operand 1, single buffered']
    #allocation6 [shape = 's32[1]{0}', space=sflag, size = 0x4, scoped, tag = 'scoped memory for tpu_custom_call.1']
    #allocation7 [shape = 'u8[1024]{0}', space=vmem, size = 0x400, scoped, tag = 'input window, operand 2, single buffered']
    #allocation8 [shape = 'u8[4096]{0}', space=vmem, size = 0x1000, scoped, tag = 'output window, operand 0, single buffered']
    %8 = vsyncpa [#allocation3], 0
    %9 = vsyncpa [#allocation6], 0
    %10 = vsyncpa [#allocation4], 0
    // Predicated region
    $region2: #{tpu_custom_call.1} parent=1 // pred_check
      _
    $region3: #{tpu_custom_call.1} parent=1 // pred_check_branch
      %12 = sbr.rel (0) target = $region5
    $region4: #{tpu_custom_call.1} parent=1 // pred_region
      %14 = vsyncadd [#allocation3], 0
      %s16 = sshll.u32 %s0, 4
      %s17 = int_to_ptr.hbm [resolvable:$true] %s16
      %s18 = sshll.u32 [#allocation2], 4
      %s19 = int_to_ptr.vmem [resolvable:$true] %s18
      %21 = dma.hbm_to_vmem [thread:$0]  %s17, 128, %s19, [#allocation3]
    $region5: #{tpu_custom_call.1} parent=1 // pred_fallthru
      _
    // Predicated region
    $region6: #{tpu_custom_call.1} parent=1 // pred_check
      _
    $region7: #{tpu_custom_call.1} parent=1 // pred_check_branch
      %23 = sbr.rel (0) target = $region9
    $region8: #{tpu_custom_call.1} parent=1 // pred_region
      %25 = vsyncadd [#allocation6], 0
      %s26 = sshll.u32 %s1, 4
      %s27 = int_to_ptr.hbm [resolvable:$true] %s26
      %s28 = sshll.u32 [#allocation5], 4
      %s29 = int_to_ptr.vmem [resolvable:$true] %s28
      %34 = dma.hbm_to_vmem [thread:$0]  %s27, 512, %s29, [#allocation6], 128, 128, 8
    $region9: #{tpu_custom_call.1} parent=1 // pred_fallthru
      _
    // Predicated region
    $region10: #{tpu_custom_call.1} parent=1 // pred_check
      _
    $region11: #{tpu_custom_call.1} parent=1 // pred_check_branch
      %36 = sbr.rel (0) target = $region13
    $region12: #{tpu_custom_call.1} parent=1 // pred_region
      %38 = vsyncadd [#allocation6], 0
      %s40 = sshll.u32 %s2, 4
      %s41 = int_to_ptr.hbm [resolvable:$true] %s40
      %s42 = sshll.u32 [#allocation7], 4
      %s43 = int_to_ptr.vmem [resolvable:$true] %s42
      %45 = dma.hbm_to_vmem [thread:$0]  %s41, 32, %s43, [#allocation6]
    $region13: #{tpu_custom_call.1} parent=1 // pred_fallthru
      _
    // Predicated region
    $region14: #{tpu_custom_call.1} parent=1 // pred_check
      _
    $region15: #{tpu_custom_call.1} parent=1 // pred_check_branch
      %47 = sbr.rel (0) target = $region17
    $region16: #{tpu_custom_call.1} parent=1 // pred_region
      %49 = dma.done [#allocation3], 128
    $region17: #{tpu_custom_call.1} parent=1 // pred_fallthru
      _
    // Predicated region
    $region18: #{tpu_custom_call.1} parent=1 // pred_check
      _
    $region19: #{tpu_custom_call.1} parent=1 // pred_check_branch
      %51 = sbr.rel (0) target = $region21
    $region20: #{tpu_custom_call.1} parent=1 // pred_region
      %53 = dma.done [#allocation6], 512
    $region21: #{tpu_custom_call.1} parent=1 // pred_fallthru
      _
    // Predicated region
    $region22: #{tpu_custom_call.1} parent=1 // pred_check
      _
    $region23: #{tpu_custom_call.1} parent=1 // pred_check_branch
      %55 = sbr.rel (0) target = $region25
    $region24: #{tpu_custom_call.1} parent=1 // pred_region
      %57 = dma.done [#allocation6], 32
    $region25: #{tpu_custom_call.1} parent=1 // pred_fallthru
      _
    %v58 = vld [vmem:[#allocation2] sm:$0xff]
    %v59 = vld [vmem:[#allocation5] sm:$0xff]
    %v60 = vld [vmem:[#allocation5 + $0x8] sm:$0xff]
    %v61 = vld [vmem:[#allocation5 + $0x10] sm:$0xff]
    %v62 = vld [vmem:[#allocation5 + $0x18] sm:$0xff]
    %v63 = vld [vmem:[#allocation7] sm:$0x3]
    %v64 = vperm.slane %v63, 0
    %vm65 = vcmask 261120
    %v67 = vsel %vm65, %v58, 0
    %69 = vmatpush.msra.mxu0 0.0
    %70 = vmatpush.msra.mxu0 0.0
    %71 = vmatpush.msra.mxu0 0.0
    %72 = vmatpush.msra.mxu0 0.0
    %73 = vmatpush.msra.mxu0 0.0
    %74 = vmatpush.msra.mxu0 0.0
    %75 = vmatpush.msra.mxu0 0.0
    %76 = vmatpush.msra.mxu0 0.0
    %77 = vmatpush.msra.mxu0 0.0
    %78 = vmatpush.msra.mxu0 0.0
    %79 = vmatpush.msra.mxu0 0.0
    %80 = vmatpush.msra.mxu0 0.0
    %81 = vmatpush.msra.mxu0 %v62
    %82 = vmatpush.msra.mxu0 %v61
    %83 = vmatpush.msra.mxu0 %v60
    %84 = vmatpush.msra.mxu0 %v59
    %85 = vmatmul.f32.gmra.mxu0 %v67
    %v86 = vpop.f32.mrf.mxu0
    %v87 = vadd.f32 %v64, %v86
    %88 = vdwg.mxu0
    %v89 = vmul.f32 %v87, 0.2
    %v90 = vmax.f32 %v87, %v89
    %v91 = vperm.slane %v63, 1
    %v92 = vadd.f32 %v90, %v91
    %v93 = vmul.f32 %v92, 0.2
    %v94 = vmax.f32 %v92, %v93
    %95 = vst [vmem:[#allocation8] sm:$0xff] %v94
    // Predicated region
    $region26: #{tpu_custom_call.1} parent=1 // pred_check
      _
    $region27: #{tpu_custom_call.1} parent=1 // pred_check_branch
      %97 = sbr.rel (0) target = $region29
    $region28: #{tpu_custom_call.1} parent=1 // pred_region
      %99 = vsyncadd [#allocation4], 0
      %s101 = sshll.u32 [#allocation8], 4
      %s102 = int_to_ptr.vmem [resolvable:$true] %s101
      %s103 = sshll.u32 %s3, 4
      %s104 = int_to_ptr.hbm [resolvable:$true] %s103
      %106 = dma.vmem_to_hbm [thread:$0]  %s102, 128, %s104, [#allocation4]
    $region29: #{tpu_custom_call.1} parent=1 // pred_fallthru
      _
    // Predicated region
    $region30: #{tpu_custom_call.1} parent=1 // pred_check
      _
    $region31: #{tpu_custom_call.1} parent=1 // pred_check_branch
      %108 = sbr.rel (0) target = $region33
    $region32: #{tpu_custom_call.1} parent=1 // pred_region
      %110 = dma.done [#allocation4], 128
    $region33: #{tpu_custom_call.1} parent=1 // pred_fallthru
      _
    %111 = vsyncpa [#allocation3], 1
    %112 = vsyncpa [#allocation6], 1
    %113 = vsyncpa [#allocation4], 1

</llo_original>
